<compile_context>
chip_gen: v5e
topology: v5e:2x2
jax: 0.10.0
libtpu: 0.0.40
codegen_flags: <defaults>
</compile_context>

<pallas_src>
import functools

import jax
import jax.numpy as jnp
from jax.experimental import pallas as pl
from jax.experimental.pallas import tpu as pltpu


def _round_up(x: int, m: int) -> int:
    return ((x + m - 1) // m) * m


def _patch_embed_kernel(x_ref, w_ref, b_ref, o_ref):
    # x_ref: (tm, K) patch tile, w_ref: (K, E_pad) projection, b_ref: (1, E_pad).
    acc = jnp.dot(x_ref[...], w_ref[...], preferred_element_type=jnp.float32)
    o_ref[...] = (acc + b_ref[...].astype(jnp.float32)).astype(o_ref.dtype)


def _choose_tile_m(M: int, K: int, E_pad: int, itemsize: int,
                   vmem_budget_bytes: int) -> int:
    """Pick the M-tile size from a VMEM budget (works for v5e/v6e/v7x defaults)."""
    m8 = _round_up(M, 8)
    # Grid-invariant weight + bias are still double-buffered by default.
    fixed = 2 * (K * E_pad + E_pad) * itemsize
    # Double-buffered input tile + double-buffered output tile per row.
    per_row = 2 * (K * itemsize + E_pad * 4)  # output stored in >= f32-ish width
    avail = max(vmem_budget_bytes - fixed, 8 * per_row)
    tm = min(avail // per_row, 512)  # 512-row tiles already reach ~85% HBM roofline
    tm = max(8, (tm // 8) * 8)
    for mult in (256, 128):          # MXU-friendly granularity when affordable
        if tm >= mult:
            tm = (tm // mult) * mult
            break
    tm = min(tm, m8)
    # v7x has 2 TensorCores: make sure the parallel axis has >= 2 steps when
    # there is enough work to split.
    if m8 > 128 and tm >= m8:
        tm = _round_up((m8 + 1) // 2, 8)
    return int(tm)


def patch_embedding(x, weight, bias, *, patch_size,
                    compute_dtype=None,
                    vmem_limit_bytes=32 * 1024 * 1024):
    """ViT patch embedding.

    Args:
      x:      [B, C, H, W]  (NCHW, like the PyTorch module)
      weight: [E, C, p, p]  (Conv2d weight layout)
      bias:   [E]
      compute_dtype: optional narrow dtype (e.g. jnp.bfloat16) for the MXU
        inputs; accumulation and bias add stay f32, output keeps x.dtype.
    Returns:
      [B, N, E] with N = (H/p)*(W/p), matching
      flatten(conv(x)).permute(0, 2, 1) of the reference module.
    """
    B, C, H, W = x.shape
    E = weight.shape[0]
    p = patch_size
    assert H % p == 0 and W % p == 0, (
        f"resolution must be divisible by patch size. H,W=({H},{W}) p={p}")
    nh, nw = H // p, W // p
    N = nh * nw
    K = C * p * p
    M = B * N

    # Patchify (glue): (B,C,nh,p,nw,p) -> (B,nh,nw,C,p,p) -> (M, K).
    # allow_input_fusion below lets XLA fuse this into the kernel's input DMA.
    patches = (
        x.reshape(B, C, nh, p, nw, p)
         .transpose(0, 2, 4, 1, 3, 5)
         .reshape(M, K)
    )
    # Conv weight -> dense projection (K, E); (C,p,p) order matches the
    # patch flattening above.  Do not change one without the other.
    w2d = weight.reshape(E, K).T
    b2d = bias.reshape(1, E).astype(jnp.float32)

    out_dtype = x.dtype
    if compute_dtype is not None:
        patches = patches.astype(compute_dtype)
        w2d = w2d.astype(compute_dtype)
    itemsize = patches.dtype.itemsize

    # Lane-dense output: pad E to a multiple of 128 (unmasked stores).
    E_pad = _round_up(E, 128)
    if E_pad != E:
        w2d = jnp.pad(w2d, ((0, 0), (0, E_pad - E)))
        b2d = jnp.pad(b2d, ((0, 0), (0, E_pad - E)))

    vmem_budget = int(0.75 * vmem_limit_bytes)
    tm = _choose_tile_m(M, K, E_pad, itemsize, vmem_budget)
    M_pad = _round_up(M, tm)
    if M_pad != M:
        patches = jnp.pad(patches, ((0, M_pad - M), (0, 0)))

    grid = (M_pad // tm,)
    out_itemsize = jnp.dtype(out_dtype).itemsize
    cost = pl.CostEstimate(
        flops=2 * M_pad * K * E_pad,
        transcendentals=0,
        bytes_accessed=(M_pad * K + K * E_pad) * itemsize
                       + M_pad * E_pad * out_itemsize,
    )

    out = pl.pallas_call(
        _patch_embed_kernel,
        out_shape=jax.ShapeDtypeStruct((M_pad, E_pad), out_dtype),
        grid_spec=pltpu.PrefetchScalarGridSpec(
            num_scalar_prefetch=0,
            grid=grid,
            in_specs=[
                pl.BlockSpec((tm, K), lambda i: (i, 0)),      # patch rows (pipelined)
                pl.BlockSpec((K, E_pad), lambda i: (0, 0)),   # projection (resident)
                pl.BlockSpec((1, E_pad), lambda i: (0, 0)),   # bias (resident)
            ],
            out_specs=pl.BlockSpec((tm, E_pad), lambda i: (i, 0)),
        ),
        compiler_params=pltpu.CompilerParams(
            dimension_semantics=("parallel",),
            vmem_limit_bytes=vmem_limit_bytes,
            allow_input_fusion=[True, False, False],
        ),
        cost_estimate=cost,
    )(patches, w2d, b2d)

    if M_pad != M or E_pad != E:
        out = out[:M, :E]
    return out.reshape(B, N, E)


def _reference(x, weight, bias, patch_size):
    # Pure-JAX reference: strided conv (NCHW, OIHW) -> flatten -> permute.
    y = jax.lax.conv_general_dilated(
        x, weight,
        window_strides=(patch_size, patch_size),
        padding="VALID",
        dimension_numbers=("NCHW", "OIHW", "NCHW"),
    ) + bias.reshape(1, -1, 1, 1)
    B, E, nh, nw = y.shape
    return y.reshape(B, E, nh * nw).transpose(0, 2, 1)


if __name__ == "__main__":
    # Small shapes consistent with the module's forward:
    # batch=2, input_channels=4, resolution=16, patch_size=8, embedding_dim=32.
    B, C, H, W = 2, 4, 16, 16
    P, E = 8, 32

    key = jax.random.PRNGKey(0)
    kx, kw, kb = jax.random.split(key, 3)

    x = jax.random.normal(kx, (B, C, H, W), dtype=jnp.float32)

    # Deterministic Conv2d-style init (uniform in +/- 1/sqrt(fan_in)).
    fan_in = C * P * P
    bound = 1.0 / jnp.sqrt(jnp.float32(fan_in))
    weight = jax.random.uniform(kw, (E, C, P, P), dtype=jnp.float32,
                                minval=-bound, maxval=bound)
    bias = jax.random.uniform(kb, (E,), dtype=jnp.float32,
                              minval=-bound, maxval=bound)

    ref = _reference(x, weight, bias, P)

    # f32 path (exact module semantics).
    out = jax.jit(functools.partial(patch_embedding, patch_size=P))(
        x, weight, bias)
    out = jax.block_until_ready(out)
    assert out.shape == (B, (H // P) * (W // P), E), out.shape
    assert jnp.allclose(out, ref, atol=1e-4, rtol=1e-4), "f32 mismatch vs reference"

    # bf16 MXU path (f32 accumulation) -- loose tolerance smoke check.
    out_bf16 = jax.jit(functools.partial(
        patch_embedding, patch_size=P, compute_dtype=jnp.bfloat16))(
        x, weight, bias)
    out_bf16 = jax.block_until_ready(out_bf16)
    assert jnp.allclose(out_bf16, ref, atol=1e-1, rtol=5e-2), "bf16 mismatch vs reference"

    print("KERNEL_OK")
</pallas_src>

<mosaic_0001>
module attributes {stable_mosaic.version = 11 : i64} {
  func.func @_patch_embed_kernel(%arg0: i32, %arg1: memref<8x256xf32, #tpu.memory_space<vmem>>, %arg2: memref<256x128xf32, #tpu.memory_space<vmem>>, %arg3: memref<1x128xf32, #tpu.memory_space<vmem>>, %arg4: memref<8x128xf32, #tpu.memory_space<vmem>>) attributes {dimension_semantics = [#tpu.dimension_semantics<parallel>], iteration_bounds = array<i64: 1>, scalar_prefetch = 0 : i64, scratch_operands = 0 : i64, tpu.core_type = #tpu.core_type<tc>, window_params = [{transform_indices = @transform_0, window_bounds = array<i64: 8, 256>}, {pipeline_mode = #tpu.pipeline_mode<synchronous>, transform_indices = @transform_1, window_bounds = array<i64: 256, 128>}, {pipeline_mode = #tpu.pipeline_mode<synchronous>, transform_indices = @transform_2, window_bounds = array<i64: 1, 128>}, {transform_indices = @transform_3, window_bounds = array<i64: 8, 128>}]} {
    %c0 = arith.constant 0 : index
    %c0_0 = arith.constant 0 : index
    %0 = vector.load %arg1[%c0, %c0_0] : memref<8x256xf32, #tpu.memory_space<vmem>>, vector<8x256xf32>
    %c0_1 = arith.constant 0 : index
    %c0_2 = arith.constant 0 : index
    %1 = vector.load %arg2[%c0_1, %c0_2] : memref<256x128xf32, #tpu.memory_space<vmem>>, vector<256x128xf32>
    %cst = arith.constant dense<0.000000e+00> : vector<8x128xf32>
    %2 = tpu.matmul %0, %1, %cst {dimension_numbers = #tpu.dot_dimension_numbers<[1], [0], [0], [1], [0, 0, 1, 1], [], []>} : vector<8x256xf32>, vector<256x128xf32>, vector<8x128xf32> -> vector<8x128xf32>
    %c0_3 = arith.constant 0 : index
    %c0_4 = arith.constant 0 : index
    %3 = vector.load %arg3[%c0_3, %c0_4] : memref<1x128xf32, #tpu.memory_space<vmem>>, vector<1x128xf32>
    %4 = vector.broadcast %3 : vector<1x128xf32> to vector<8x128xf32>
    %5 = arith.addf %2, %4 : vector<8x128xf32>
    %c0_5 = arith.constant 0 : index
    %c0_6 = arith.constant 0 : index
    %6 = vector.load %arg4[%c0_5, %c0_6] : memref<8x128xf32, #tpu.memory_space<vmem>>, vector<8x128xf32>
    tpu.vector_store %arg4[%c0_5, %c0_6], %5 {strides = array<i32>} : memref<8x128xf32, #tpu.memory_space<vmem>>, vector<8x128xf32>,
    return
  }
  func.func @transform_0(%arg0: i32) -> (i32, i32) {
    %c0_i32 = arith.constant 0 : i32
    %c0_i32_0 = arith.constant 0 : i32
    return %arg0, %c0_i32 : i32, i32
  }
  func.func @transform_1(%arg0: i32) -> (i32, i32) {
    %c0_i32 = arith.constant 0 : i32
    %c0_i32_0 = arith.constant 0 : i32
    %c0_i32_1 = arith.constant 0 : i32
    return %c0_i32, %c0_i32_0 : i32, i32
  }
  func.func @transform_2(%arg0: i32) -> (i32, i32) {
    %c0_i32 = arith.constant 0 : i32
    %c0_i32_0 = arith.constant 0 : i32
    %c0_i32_1 = arith.constant 0 : i32
    return %c0_i32, %c0_i32_0 : i32, i32
  }
  func.func @transform_3(%arg0: i32) -> (i32, i32) {
    %c0_i32 = arith.constant 0 : i32
    %c0_i32_0 = arith.constant 0 : i32
    return %arg0, %c0_i32 : i32, i32
  }
}

</mosaic_0001>

<llo_original>
// kernel: patch_embedding.1
$region0: #{patch_embedding.1}
  #allocation0 [shape = 'u32[]', space=smem, size = 0x4, offset = 0x4, fixed_abs, tag = 'smem constant byte address 0x4 - core index']
  #allocation1 [shape = 'u32[72,128]{1,0:T(1,128)}', space=vmem, size = 0x9000, scoped, tag = 'internal scratch']
  %s0 = inlined_call_operand.vmem [shape: f32[8,256], index: 0, kind: input, shape index: {}]
  %s1 = inlined_call_operand.vmem [shape: f32[256,128], index: 1, kind: input, shape index: {}]
  %s2 = inlined_call_operand.vmem [shape: f32[1,128], index: 2, kind: input, shape index: {}]
  %s3 = inlined_call_operand.hbm [shape: f32[8,128], index: 3, kind: output, shape index: {}]
  %s4 = sld [smem:[#allocation0]]
  $region22: #{patch_embedding.1} parent=0
    _
  %s6 = ssub.s32 1, %s4
  %s7 = scalar_select 0, %s6, %s4
  $region1: #{patch_embedding.1} parent=0
    #allocation2 [shape = 'u8[4096]{0}', space=vmem, size = 0x1000, scoped, tag = 'output window, operand 0, single buffered']
    #allocation3 [shape = 's32[1]{0}', space=sflag, size = 0x4, scoped, tag = 'scoped memory for patch_embedding.1']
    %8 = vsyncpa [#allocation3], 0
    // Predicated region
    $region2: #{patch_embedding.1} parent=1 // pred_check
      _
    $region3: #{patch_embedding.1} parent=1 // pred_check_branch
      %10 = sbr.rel (0) target = $region5
    $region4: #{patch_embedding.1} parent=1 // pred_region
      _
    $region5: #{patch_embedding.1} parent=1 // pred_fallthru
      _
    // Predicated region
    $region6: #{patch_embedding.1} parent=1 // pred_check
      _
    $region7: #{patch_embedding.1} parent=1 // pred_check_branch
      %12 = sbr.rel (0) target = $region9
    $region8: #{patch_embedding.1} parent=1 // pred_region
      _
    $region9: #{patch_embedding.1} parent=1 // pred_fallthru
      _
    // Predicated region
    $region10: #{patch_embedding.1} parent=1 // pred_check
      _
    $region11: #{patch_embedding.1} parent=1 // pred_check_branch
      %14 = sbr.rel (0) target = $region13
    $region12: #{patch_embedding.1} parent=1 // pred_region
      _
    $region13: #{patch_embedding.1} parent=1 // pred_fallthru
      _
    %v15 = vld [vmem:[%s0] sm:$0xff]
    %v16 = vld [vmem:[%s0 + $0x8] sm:$0xff]
    %v17 = vld [vmem:[%s1] sm:$0xff]
    %v18 = vld [vmem:[%s1 + $0x8] sm:$0xff]
    %v19 = vld [vmem:[%s1 + $0x10] sm:$0xff]
    %v20 = vld [vmem:[%s1 + $0x18] sm:$0xff]
    %v21 = vld [vmem:[%s1 + $0x20] sm:$0xff]
    %v22 = vld [vmem:[%s1 + $0x28] sm:$0xff]
    %v23 = vld [vmem:[%s1 + $0x30] sm:$0xff]
    %v24 = vld [vmem:[%s1 + $0x38] sm:$0xff]
    %v25 = vld [vmem:[%s1 + $0x40] sm:$0xff]
    %v26 = vld [vmem:[%s1 + $0x48] sm:$0xff]
    %v27 = vld [vmem:[%s1 + $0x50] sm:$0xff]
    %v28 = vld [vmem:[%s1 + $0x58] sm:$0xff]
    %v29 = vld [vmem:[%s1 + $0x60] sm:$0xff]
    %v30 = vld [vmem:[%s1 + $0x68] sm:$0xff]
    %v31 = vld [vmem:[%s1 + $0x70] sm:$0xff]
    %v32 = vld [vmem:[%s1 + $0x78] sm:$0xff]
    %v33 = vld [vmem:[%s1 + $0x80] sm:$0xff]
    %v34 = vld [vmem:[%s1 + $0x88] sm:$0xff]
    %v35 = vld [vmem:[%s1 + $0x90] sm:$0xff]
    %v36 = vld [vmem:[%s1 + $0x98] sm:$0xff]
    %v37 = vld [vmem:[%s1 + $0xa0] sm:$0xff]
    %v38 = vld [vmem:[%s1 + $0xa8] sm:$0xff]
    %v39 = vld [vmem:[%s1 + $0xb0] sm:$0xff]
    %v40 = vld [vmem:[%s1 + $0xb8] sm:$0xff]
    %v41 = vld [vmem:[%s1 + $0xc0] sm:$0xff]
    %v42 = vld [vmem:[%s1 + $0xc8] sm:$0xff]
    %v43 = vld [vmem:[%s1 + $0xd0] sm:$0xff]
    %v44 = vld [vmem:[%s1 + $0xd8] sm:$0xff]
    %v45 = vld [vmem:[%s1 + $0xe0] sm:$0xff]
    %v46 = vld [vmem:[%s1 + $0xe8] sm:$0xff]
    %v47 = vld [vmem:[%s1 + $0xf0] sm:$0xff]
    %v48 = vld [vmem:[%s1 + $0xf8] sm:$0xff]
    %v49 = vld [vmem:[%s2] sm:$0x1]
    %v51 = vperm.slane %v49, 0
    %53 = vmatpush.msra.mxu0 %v32
    %54 = vmatpush.msra.mxu0 %v31
    %55 = vmatpush.msra.mxu0 %v30
    %56 = vmatpush.msra.mxu0 %v29
    %57 = vmatpush.msra.mxu0 %v28
    %58 = vmatpush.msra.mxu0 %v27
    %59 = vmatpush.msra.mxu0 %v26
    %60 = vmatpush.msra.mxu0 %v25
    %61 = vmatpush.msra.mxu0 %v24
    %62 = vmatpush.msra.mxu0 %v23
    %63 = vmatpush.msra.mxu0 %v22
    %64 = vmatpush.msra.mxu0 %v21
    %65 = vmatpush.msra.mxu0 %v20
    %66 = vmatpush.msra.mxu0 %v19
    %67 = vmatpush.msra.mxu0 %v18
    %68 = vmatpush.msra.mxu0 %v17
    %69 = vmatmul.f32.gmra.mxu0 %v15
    %v70 = vpop.f32.mrf.mxu0
    %v71 = vadd.f32 %v51, %v70
    %72 = vdwg.mxu0
    %73 = vmatpush.msra.mxu0 %v48
    %74 = vmatpush.msra.mxu0 %v47
    %75 = vmatpush.msra.mxu0 %v46
    %76 = vmatpush.msra.mxu0 %v45
    %77 = vmatpush.msra.mxu0 %v44
    %78 = vmatpush.msra.mxu0 %v43
    %79 = vmatpush.msra.mxu0 %v42
    %80 = vmatpush.msra.mxu0 %v41
    %81 = vmatpush.msra.mxu0 %v40
    %82 = vmatpush.msra.mxu0 %v39
    %83 = vmatpush.msra.mxu0 %v38
    %84 = vmatpush.msra.mxu0 %v37
    %85 = vmatpush.msra.mxu0 %v36
    %86 = vmatpush.msra.mxu0 %v35
    %87 = vmatpush.msra.mxu0 %v34
    %88 = vmatpush.msra.mxu0 %v33
    %89 = vmatmul.f32.gmra.mxu0 %v16
    %v90 = vpop.f32.mrf.mxu0
    %v91 = vadd.f32 %v71, %v90
    %92 = vdwg.mxu0
    %93 = vst [vmem:[#allocation2] sm:$0xff] %v91
    // Predicated region
    $region14: #{patch_embedding.1} parent=1 // pred_check
      _
    $region15: #{patch_embedding.1} parent=1 // pred_check_branch
      %95 = sbr.rel (0) target = $region17
    $region16: #{patch_embedding.1} parent=1 // pred_region
      %97 = vsyncadd [#allocation3], 0
      %s99 = sshll.u32 [#allocation2], 4
      %s100 = int_to_ptr.vmem [resolvable:$true] %s99
      %s101 = sshll.u32 %s3, 4
      %s102 = int_to_ptr.hbm [resolvable:$true] %s101
      %104 = dma.vmem_to_hbm [thread:$0]  %s100, 128, %s102, [#allocation3]
    $region17: #{patch_embedding.1} parent=1 // pred_fallthru
      _
    // Predicated region
    $region18: #{patch_embedding.1} parent=1 // pred_check
      _
    $region19: #{patch_embedding.1} parent=1 // pred_check_branch
      %106 = sbr.rel (0) target = $region21
    $region20: #{patch_embedding.1} parent=1 // pred_region
      %108 = dma.done [#allocation3], 128
    $region21: #{patch_embedding.1} parent=1 // pred_fallthru
      _
    %109 = vsyncpa [#allocation3], 1

</llo_original>
